<compile_context>
chip_gen: v6e
topology: v6e:2x2x1
jax: 0.10.0
libtpu: 0.0.40
codegen_flags: <defaults>
</compile_context>

<pallas_src>
import jax
import jax.numpy as jnp
from jax.experimental import pallas as pl
from jax.experimental.pallas import tpu as pltpu


_TARGET_TILE_ELEMS = 512 * 1024   # ~2 MiB f32 per input tile
_MAX_TILE_C = 16384               # <= 128 lane-groups unrolled per tile
_MAX_TILE_R = 2048                # <= 256 sublane-groups unrolled per tile


def _round_up(x, m):
    return (x + m - 1) // m * m


def _pick_tile(padded_dim, align, cap):
    """Largest multiple of `align` that divides `padded_dim` and is <= cap."""
    cap = max(cap // align * align, align)
    if padded_dim <= cap:
        return padded_dim
    n = padded_dim // align
    best = 1
    d = 1
    while d * d <= n:
        if n % d == 0:
            if d * align <= cap:
                best = max(best, d)
            if (n // d) * align <= cap:
                best = max(best, n // d)
        d += 1
    return best * align


def _make_partial_sum_kernel(elementwise_fn, tile_r, tile_c, valid_r, valid_c,
                             needs_mask):
    """Fused elementwise `_forward` + VPU-only partial reduce to one (8,128) vreg."""

    def kernel(mhat_ref, data_ref, out_ref):
        # Upcast so bf16 inputs accumulate in f32 (mandatory on v5e: no bf16 VPU).
        a = mhat_ref[...].astype(jnp.float32)
        b = data_ref[...].astype(jnp.float32)
        vals = elementwise_fn(a, b).astype(jnp.float32)

        if needs_mask:  # static Python flag: only emitted for padded inputs
            i = pl.program_id(0)
            j = pl.program_id(1)
            rows = jax.lax.broadcasted_iota(jnp.int32, (tile_r, tile_c), 0) + i * tile_r
            cols = jax.lax.broadcasted_iota(jnp.int32, (tile_r, tile_c), 1) + j * tile_c
            vals = jnp.where((rows < valid_r) & (cols < valid_c), vals, 0.0)

        # VPU-only partial reduction using (8,128)-aligned static slices:
        # collapse lane-groups (columns), then sublane-groups (rows), down to a
        # single (8, 128) vreg.  No XLU tree reduce, no reshape relayouts, no
        # SMEM scalar round-trip per tile.
        col = vals[:, 0:128]
        for k in range(1, tile_c // 128):
            col = col + vals[:, k * 128:(k + 1) * 128]
        acc = col[0:8, :]
        for r in range(1, tile_r // 8):
            acc = acc + col[r * 8:(r + 1) * 8, :]
        out_ref[...] = acc

    return kernel


def _pallas_sum_of(elementwise_fn, M_hat, batch_data):
    M_hat = jnp.asarray(M_hat)
    batch_data = jnp.asarray(batch_data)
    assert M_hat.ndim == 2, "HilbertLoss expects 2-D (M_hat, batch_data)"
    R, C = M_hat.shape
    assert batch_data.shape == (R, C), "batch_data must match M_hat shape"

    # --- tile selection (lane axis first, then rows; tiles divide padded dims) ---
    r_pad = _round_up(R, 8)
    c_pad = _round_up(C, 128)
    tile_c = _pick_tile(c_pad, 128, min(_MAX_TILE_C, _TARGET_TILE_ELEMS // 8))
    tile_r = _pick_tile(r_pad, 8,
                        min(_MAX_TILE_R, max(8, _TARGET_TILE_ELEMS // tile_c)))

    needs_mask = (r_pad != R) or (c_pad != C)
    if needs_mask:
        # TODO(synk): padding copies the inputs in HBM; a production kernel
        # would mask only the ragged boundary blocks instead of padding.
        pad = ((0, r_pad - R), (0, c_pad - C))
        M_hat = jnp.pad(M_hat, pad)
        batch_data = jnp.pad(batch_data, pad)

    gr = r_pad // tile_r
    gc = c_pad // tile_c

    in_bytes = (M_hat.size * M_hat.dtype.itemsize
                + batch_data.size * batch_data.dtype.itemsize)
    cost = pl.CostEstimate(
        flops=3 * r_pad * c_pad,
        transcendentals=0,
        bytes_accessed=in_bytes + gr * gc * 8 * 128 * 4,
    )

    kernel = _make_partial_sum_kernel(
        elementwise_fn, tile_r, tile_c, R, C, needs_mask)

    partials = pl.pallas_call(
        kernel,
        out_shape=jax.ShapeDtypeStruct((gr * 8, gc * 128), jnp.float32),
        grid_spec=pltpu.PrefetchScalarGridSpec(
            num_scalar_prefetch=0,
            grid=(gr, gc),
            in_specs=[
                pl.BlockSpec((tile_r, tile_c), lambda i, j: (i, j)),
                pl.BlockSpec((tile_r, tile_c), lambda i, j: (i, j)),
            ],
            out_specs=pl.BlockSpec((8, 128), lambda i, j: (i, j)),
        ),
        compiler_params=pltpu.CompilerParams(
            dimension_semantics=("parallel", "parallel"),
            vmem_limit_bytes=32 * 1024 * 1024,
        ),
        cost_estimate=cost,
    )(M_hat, batch_data)

    # Tiny final reduction outside the kernel.  Keeping every block's partial
    # sum in its own lane-dense slot is what lets both grid axes stay 'parallel'.
    return jnp.sum(partials)


class HilbertLoss:
    """JAX/Pallas port of hilbert.loss.HilbertLoss (abstract base)."""

    def __init__(self, ncomponents):
        # ncomponents unused by the base class, kept for signature parity.
        self.ncomponents = ncomponents

    def __call__(self, M_hat, batch_data):
        return self.forward(M_hat, batch_data)

    def forward(self, M_hat, batch_data):
        # torch.sum(self._forward(M_hat, batch_data)) — both the elementwise
        # _forward of the concrete subclass and the sum run inside the kernel.
        return _pallas_sum_of(self._forward, M_hat, batch_data)

    def _forward(self, M_hat, batch_data):
        # TODO(synk): `_forward` is abstract in the PyTorch module; subclasses
        # must override it.  A concrete demo subclass is provided below.
        raise NotImplementedError("Subclasses must override `_forward`.")


class _DemoSquareErrorLoss(HilbertLoss):
    """Minimal concrete subclass used only to exercise the base-class kernel."""

    def _forward(self, M_hat, batch_data):
        d = M_hat - batch_data
        return d * d


if __name__ == "__main__":
    key = jax.random.PRNGKey(0)
    loss_mod = _DemoSquareErrorLoss(ncomponents=300)

    # Case 1: non-tile-aligned small shape (exercises padding + mask path).
    k1, k2, k3, k4 = jax.random.split(key, 4)
    R, C = 200, 300
    M_hat = jax.random.normal(k1, (R, C), dtype=jnp.float32)
    batch_data = jax.random.normal(k2, (R, C), dtype=jnp.float32)
    out = jax.block_until_ready(loss_mod(M_hat, batch_data))
    ref = jnp.sum((M_hat - batch_data) ** 2)
    assert jnp.allclose(out, ref, rtol=1e-4, atol=1e-3), (out, ref)

    # Case 2: tile-aligned shape (fast path, no masking emitted).
    R2, C2 = 256, 384
    M_hat2 = jax.random.normal(k3, (R2, C2), dtype=jnp.float32)
    batch_data2 = jax.random.normal(k4, (R2, C2), dtype=jnp.float32)
    out2 = jax.block_until_ready(loss_mod(M_hat2, batch_data2))
    ref2 = jnp.sum((M_hat2 - batch_data2) ** 2)
    assert jnp.allclose(out2, ref2, rtol=1e-4, atol=1e-3), (out2, ref2)

    print("KERNEL_OK")
</pallas_src>

<mosaic_0001>
module attributes {stable_mosaic.version = 11 : i64} {
  func.func @kernel(%arg0: i32, %arg1: i32, %arg2: memref<200x384xf32, #tpu.memory_space<vmem>>, %arg3: memref<200x384xf32, #tpu.memory_space<vmem>>, %arg4: memref<8x128xf32, #tpu.memory_space<vmem>>) attributes {dimension_semantics = [#tpu.dimension_semantics<parallel>, #tpu.dimension_semantics<parallel>], iteration_bounds = array<i64: 1, 1>, scalar_prefetch = 0 : i64, scratch_operands = 0 : i64, tpu.core_type = #tpu.core_type<tc>, window_params = [{transform_indices = @transform_0, window_bounds = array<i64: 200, 384>}, {transform_indices = @transform_1, window_bounds = array<i64: 200, 384>}, {transform_indices = @transform_2, window_bounds = array<i64: 8, 128>}]} {
    %c0 = arith.constant 0 : index
    %c0_0 = arith.constant 0 : index
    %0 = vector.load %arg2[%c0, %c0_0] : memref<200x384xf32, #tpu.memory_space<vmem>>, vector<200x384xf32>
    %c0_1 = arith.constant 0 : index
    %c0_2 = arith.constant 0 : index
    %1 = vector.load %arg3[%c0_1, %c0_2] : memref<200x384xf32, #tpu.memory_space<vmem>>, vector<200x384xf32>
    %2 = arith.subf %0, %1 : vector<200x384xf32>
    %3 = arith.mulf %2, %2 : vector<200x384xf32>
    %4 = tpu.iota {dimensions = array<i32: 0>} : vector<200x384xi32>
    %c200_i32 = arith.constant 200 : i32
    %5 = arith.muli %arg0, %c200_i32 : i32
    %6 = vector.broadcast %5 : i32 to vector<200x384xi32>
    %7 = arith.addi %4, %6 : vector<200x384xi32>
    %8 = tpu.iota {dimensions = array<i32: 1>} : vector<200x384xi32>
    %c384_i32 = arith.constant 384 : i32
    %9 = arith.muli %arg1, %c384_i32 : i32
    %10 = vector.broadcast %9 : i32 to vector<200x384xi32>
    %11 = arith.addi %8, %10 : vector<200x384xi32>
    %c200_i32_3 = arith.constant 200 : i32
    %12 = vector.broadcast %c200_i32_3 : i32 to vector<200x384xi32>
    %13 = arith.cmpi slt, %7, %12 : vector<200x384xi32>
    %c300_i32 = arith.constant 300 : i32
    %14 = vector.broadcast %c300_i32 : i32 to vector<200x384xi32>
    %15 = arith.cmpi slt, %11, %14 : vector<200x384xi32>
    %16 = arith.andi %13, %15 : vector<200x384xi1>
    %cst = arith.constant 0.000000e+00 : f32
    %17 = vector.broadcast %cst : f32 to vector<200x384xf32>
    %18 = arith.select %16, %3, %17 : vector<200x384xi1>, vector<200x384xf32>
    %19 = vector.extract_strided_slice %18 {offsets = [0, 0], sizes = [200, 128], strides = [1, 1]} : vector<200x384xf32> to vector<200x128xf32>
    %20 = vector.extract_strided_slice %18 {offsets = [0, 128], sizes = [200, 128], strides = [1, 1]} : vector<200x384xf32> to vector<200x128xf32>
    %21 = arith.addf %19, %20 : vector<200x128xf32>
    %22 = vector.extract_strided_slice %18 {offsets = [0, 256], sizes = [200, 128], strides = [1, 1]} : vector<200x384xf32> to vector<200x128xf32>
    %23 = arith.addf %21, %22 : vector<200x128xf32>
    %24 = vector.extract_strided_slice %23 {offsets = [0, 0], sizes = [8, 128], strides = [1, 1]} : vector<200x128xf32> to vector<8x128xf32>
    %25 = vector.extract_strided_slice %23 {offsets = [8, 0], sizes = [8, 128], strides = [1, 1]} : vector<200x128xf32> to vector<8x128xf32>
    %26 = arith.addf %24, %25 : vector<8x128xf32>
    %27 = vector.extract_strided_slice %23 {offsets = [16, 0], sizes = [8, 128], strides = [1, 1]} : vector<200x128xf32> to vector<8x128xf32>
    %28 = arith.addf %26, %27 : vector<8x128xf32>
    %29 = vector.extract_strided_slice %23 {offsets = [24, 0], sizes = [8, 128], strides = [1, 1]} : vector<200x128xf32> to vector<8x128xf32>
    %30 = arith.addf %28, %29 : vector<8x128xf32>
    %31 = vector.extract_strided_slice %23 {offsets = [32, 0], sizes = [8, 128], strides = [1, 1]} : vector<200x128xf32> to vector<8x128xf32>
    %32 = arith.addf %30, %31 : vector<8x128xf32>
    %33 = vector.extract_strided_slice %23 {offsets = [40, 0], sizes = [8, 128], strides = [1, 1]} : vector<200x128xf32> to vector<8x128xf32>
    %34 = arith.addf %32, %33 : vector<8x128xf32>
    %35 = vector.extract_strided_slice %23 {offsets = [48, 0], sizes = [8, 128], strides = [1, 1]} : vector<200x128xf32> to vector<8x128xf32>
    %36 = arith.addf %34, %35 : vector<8x128xf32>
    %37 = vector.extract_strided_slice %23 {offsets = [56, 0], sizes = [8, 128], strides = [1, 1]} : vector<200x128xf32> to vector<8x128xf32>
    %38 = arith.addf %36, %37 : vector<8x128xf32>
    %39 = vector.extract_strided_slice %23 {offsets = [64, 0], sizes = [8, 128], strides = [1, 1]} : vector<200x128xf32> to vector<8x128xf32>
    %40 = arith.addf %38, %39 : vector<8x128xf32>
    %41 = vector.extract_strided_slice %23 {offsets = [72, 0], sizes = [8, 128], strides = [1, 1]} : vector<200x128xf32> to vector<8x128xf32>
    %42 = arith.addf %40, %41 : vector<8x128xf32>
    %43 = vector.extract_strided_slice %23 {offsets = [80, 0], sizes = [8, 128], strides = [1, 1]} : vector<200x128xf32> to vector<8x128xf32>
    %44 = arith.addf %42, %43 : vector<8x128xf32>
    %45 = vector.extract_strided_slice %23 {offsets = [88, 0], sizes = [8, 128], strides = [1, 1]} : vector<200x128xf32> to vector<8x128xf32>
    %46 = arith.addf %44, %45 : vector<8x128xf32>
    %47 = vector.extract_strided_slice %23 {offsets = [96, 0], sizes = [8, 128], strides = [1, 1]} : vector<200x128xf32> to vector<8x128xf32>
    %48 = arith.addf %46, %47 : vector<8x128xf32>
    %49 = vector.extract_strided_slice %23 {offsets = [104, 0], sizes = [8, 128], strides = [1, 1]} : vector<200x128xf32> to vector<8x128xf32>
    %50 = arith.addf %48, %49 : vector<8x128xf32>
    %51 = vector.extract_strided_slice %23 {offsets = [112, 0], sizes = [8, 128], strides = [1, 1]} : vector<200x128xf32> to vector<8x128xf32>
    %52 = arith.addf %50, %51 : vector<8x128xf32>
    %53 = vector.extract_strided_slice %23 {offsets = [120, 0], sizes = [8, 128], strides = [1, 1]} : vector<200x128xf32> to vector<8x128xf32>
    %54 = arith.addf %52, %53 : vector<8x128xf32>
    %55 = vector.extract_strided_slice %23 {offsets = [128, 0], sizes = [8, 128], strides = [1, 1]} : vector<200x128xf32> to vector<8x128xf32>
    %56 = arith.addf %54, %55 : vector<8x128xf32>
    %57 = vector.extract_strided_slice %23 {offsets = [136, 0], sizes = [8, 128], strides = [1, 1]} : vector<200x128xf32> to vector<8x128xf32>
    %58 = arith.addf %56, %57 : vector<8x128xf32>
    %59 = vector.extract_strided_slice %23 {offsets = [144, 0], sizes = [8, 128], strides = [1, 1]} : vector<200x128xf32> to vector<8x128xf32>
    %60 = arith.addf %58, %59 : vector<8x128xf32>
    %61 = vector.extract_strided_slice %23 {offsets = [152, 0], sizes = [8, 128], strides = [1, 1]} : vector<200x128xf32> to vector<8x128xf32>
    %62 = arith.addf %60, %61 : vector<8x128xf32>
    %63 = vector.extract_strided_slice %23 {offsets = [160, 0], sizes = [8, 128], strides = [1, 1]} : vector<200x128xf32> to vector<8x128xf32>
    %64 = arith.addf %62, %63 : vector<8x128xf32>
    %65 = vector.extract_strided_slice %23 {offsets = [168, 0], sizes = [8, 128], strides = [1, 1]} : vector<200x128xf32> to vector<8x128xf32>
    %66 = arith.addf %64, %65 : vector<8x128xf32>
    %67 = vector.extract_strided_slice %23 {offsets = [176, 0], sizes = [8, 128], strides = [1, 1]} : vector<200x128xf32> to vector<8x128xf32>
    %68 = arith.addf %66, %67 : vector<8x128xf32>
    %69 = vector.extract_strided_slice %23 {offsets = [184, 0], sizes = [8, 128], strides = [1, 1]} : vector<200x128xf32> to vector<8x128xf32>
    %70 = arith.addf %68, %69 : vector<8x128xf32>
    %71 = vector.extract_strided_slice %23 {offsets = [192, 0], sizes = [8, 128], strides = [1, 1]} : vector<200x128xf32> to vector<8x128xf32>
    %72 = arith.addf %70, %71 : vector<8x128xf32>
    %c0_4 = arith.constant 0 : index
    %c0_5 = arith.constant 0 : index
    %73 = vector.load %arg4[%c0_4, %c0_5] : memref<8x128xf32, #tpu.memory_space<vmem>>, vector<8x128xf32>
    tpu.vector_store %arg4[%c0_4, %c0_5], %72 {strides = array<i32>} : memref<8x128xf32, #tpu.memory_space<vmem>>, vector<8x128xf32>,
    return
  }
  func.func @transform_0(%arg0: i32, %arg1: i32) -> (i32, i32) {
    %c0_i32 = arith.constant 0 : i32
    return %arg0, %arg1 : i32, i32
  }
  func.func @transform_1(%arg0: i32, %arg1: i32) -> (i32, i32) {
    %c0_i32 = arith.constant 0 : i32
    return %arg0, %arg1 : i32, i32
  }
  func.func @transform_2(%arg0: i32, %arg1: i32) -> (i32, i32) {
    %c0_i32 = arith.constant 0 : i32
    return %arg0, %arg1 : i32, i32
  }
}

</mosaic_0001>

<llo_original>
// kernel: tpu_custom_call.1
$region0: #{tpu_custom_call.1}
  #allocation0 [shape = 'u32[]', space=smem, size = 0x4, offset = 0x4, fixed_abs, tag = 'smem constant byte address 0x4 - core index']
  #allocation1 [shape = 'u32[144,128]{1,0:T(1,128)}', space=vmem, size = 0x12000, scoped, tag = 'internal scratch']
  %s0 = inlined_call_operand.hbm [shape: f32[200,384], index: 0, kind: input, shape index: {}]
  %s1 = inlined_call_operand.hbm [shape: f32[200,384], index: 1, kind: input, shape index: {}]
  %s2 = inlined_call_operand.hbm [shape: f32[8,128], index: 2, kind: output, shape index: {}]
  %s3 = sld [smem:[#allocation0]]
  $region26: #{tpu_custom_call.1} parent=0
    _
  %s5 = ssub.s32 1, %s3
  %s6 = scalar_select 0, %s5, %s3
  $region1: #{tpu_custom_call.1} parent=0
    #allocation2 [shape = 'u8[307200]{0}', space=vmem, size = 0x4b000, scoped, tag = 'input window, operand 0, single buffered']
    #allocation3 [shape = 's32[1]{0}', space=sflag, size = 0x4, scoped, tag = 'scoped memory for tpu_custom_call.1']
    #allocation4 [shape = 's32[1]{0}', space=sflag, size = 0x4, scoped, tag = 'scoped memory for tpu_custom_call.1']
    #allocation5 [shape = 'u8[307200]{0}', space=vmem, size = 0x4b000, scoped, tag = 'input window, operand 1, single buffered']
    #allocation6 [shape = 's32[1]{0}', space=sflag, size = 0x4, scoped, tag = 'scoped memory for tpu_custom_call.1']
    #allocation7 [shape = 'u8[4096]{0}', space=vmem, size = 0x1000, scoped, tag = 'output window, operand 0, single buffered']
    %7 = vsyncpa [#allocation3], 0
    %8 = vsyncpa [#allocation6], 0
    %9 = vsyncpa [#allocation4], 0
    // Predicated region
    $region2: #{tpu_custom_call.1} parent=1 // pred_check
      _
    $region3: #{tpu_custom_call.1} parent=1 // pred_check_branch
      %11 = sbr.rel (0) target = $region5
    $region4: #{tpu_custom_call.1} parent=1 // pred_region
      %s13 = ssub.s32 9600, 9600
      %14 = vsyncadd [#allocation3], %s13
      %s15 = sshll.u32 [#allocation2], 4
      %s16 = int_to_ptr.vmem [resolvable:$true] %s15
      %21 = dma.hbm_to_vmem [thread:$0]  %s0, 9600, %s16, [#allocation3], 384, 384, 24
    $region5: #{tpu_custom_call.1} parent=1 // pred_fallthru
      _
    // Predicated region
    $region6: #{tpu_custom_call.1} parent=1 // pred_check
      _
    $region7: #{tpu_custom_call.1} parent=1 // pred_check_branch
      %23 = sbr.rel (0) target = $region9
    $region8: #{tpu_custom_call.1} parent=1 // pred_region
      %s25 = ssub.s32 9600, 9600
      %26 = vsyncadd [#allocation6], %s25
      %s27 = sshll.u32 [#allocation5], 4
      %s28 = int_to_ptr.vmem [resolvable:$true] %s27
      %33 = dma.hbm_to_vmem [thread:$0]  %s1, 9600, %s28, [#allocation6], 384, 384, 24
    $region9: #{tpu_custom_call.1} parent=1 // pred_fallthru
      _
    // Predicated region
    $region10: #{tpu_custom_call.1} parent=1 // pred_check
      _
    $region11: #{tpu_custom_call.1} parent=1 // pred_check_branch
      %35 = sbr.rel (0) target = $region13
    $region12: #{tpu_custom_call.1} parent=1 // pred_region
      %36 = dma.done [#allocation3], 9600
    $region13: #{tpu_custom_call.1} parent=1 // pred_fallthru
      _
    // Predicated region
    $region14: #{tpu_custom_call.1} parent=1 // pred_check
      _
    $region15: #{tpu_custom_call.1} parent=1 // pred_check_branch
      %38 = sbr.rel (0) target = $region17
    $region16: #{tpu_custom_call.1} parent=1 // pred_region
      %39 = dma.done [#allocation6], 9600
    $region17: #{tpu_custom_call.1} parent=1 // pred_fallthru
      _
    %v40 = vld [vmem:[#allocation2] sm:$0xff]
    %v41 = vld [vmem:[#allocation2 + $0x8] sm:$0xff]
    %v42 = vld [vmem:[#allocation2 + $0x10] sm:$0xff]
    %v43 = vld [vmem:[#allocation2 + $0x18] sm:$0xff]
    %v44 = vld [vmem:[#allocation2 + $0x20] sm:$0xff]
    %v45 = vld [vmem:[#allocation2 + $0x28] sm:$0xff]
    %v46 = vld [vmem:[#allocation2 + $0x30] sm:$0xff]
    %v47 = vld [vmem:[#allocation2 + $0x38] sm:$0xff]
    %v48 = vld [vmem:[#allocation2 + $0x40] sm:$0xff]
    %v49 = vld [vmem:[#allocation2 + $0x48] sm:$0xff]
    %v50 = vld [vmem:[#allocation2 + $0x50] sm:$0xff]
    %v51 = vld [vmem:[#allocation2 + $0x58] sm:$0xff]
    %v52 = vld [vmem:[#allocation2 + $0x60] sm:$0xff]
    %v53 = vld [vmem:[#allocation2 + $0x68] sm:$0xff]
    %v54 = vld [vmem:[#allocation2 + $0x70] sm:$0xff]
    %v55 = vld [vmem:[#allocation2 + $0x78] sm:$0xff]
    %v56 = vld [vmem:[#allocation2 + $0x80] sm:$0xff]
    %v57 = vld [vmem:[#allocation2 + $0x88] sm:$0xff]
    %v58 = vld [vmem:[#allocation2 + $0x90] sm:$0xff]
    %v59 = vld [vmem:[#allocation2 + $0x98] sm:$0xff]
    %v60 = vld [vmem:[#allocation2 + $0xa0] sm:$0xff]
    %v61 = vld [vmem:[#allocation2 + $0xa8] sm:$0xff]
    %v62 = vld [vmem:[#allocation2 + $0xb0] sm:$0xff]
    %v63 = vld [vmem:[#allocation2 + $0xb8] sm:$0xff]
    %v64 = vld [vmem:[#allocation2 + $0xc0] sm:$0xff]
    %v65 = vld [vmem:[#allocation2 + $0xc8] sm:$0xff]
    %v66 = vld [vmem:[#allocation2 + $0xd0] sm:$0xff]
    %v67 = vld [vmem:[#allocation2 + $0xd8] sm:$0xff]
    %v68 = vld [vmem:[#allocation2 + $0xe0] sm:$0xff]
    %v69 = vld [vmem:[#allocation2 + $0xe8] sm:$0xff]
    %v70 = vld [vmem:[#allocation2 + $0xf0] sm:$0xff]
    %v71 = vld [vmem:[#allocation2 + $0xf8] sm:$0xff]
    %v72 = vld [vmem:[#allocation2 + $0x100] sm:$0xff]
    %v73 = vld [vmem:[#allocation2 + $0x108] sm:$0xff]
    %v74 = vld [vmem:[#allocation2 + $0x110] sm:$0xff]
    %v75 = vld [vmem:[#allocation2 + $0x118] sm:$0xff]
    %v76 = vld [vmem:[#allocation2 + $0x120] sm:$0xff]
    %v77 = vld [vmem:[#allocation2 + $0x128] sm:$0xff]
    %v78 = vld [vmem:[#allocation2 + $0x130] sm:$0xff]
    %v79 = vld [vmem:[#allocation2 + $0x138] sm:$0xff]
    %v80 = vld [vmem:[#allocation2 + $0x140] sm:$0xff]
    %v81 = vld [vmem:[#allocation2 + $0x148] sm:$0xff]
    %v82 = vld [vmem:[#allocation2 + $0x150] sm:$0xff]
    %v83 = vld [vmem:[#allocation2 + $0x158] sm:$0xff]
    %v84 = vld [vmem:[#allocation2 + $0x160] sm:$0xff]
    %v85 = vld [vmem:[#allocation2 + $0x168] sm:$0xff]
    %v86 = vld [vmem:[#allocation2 + $0x170] sm:$0xff]
    %v87 = vld [vmem:[#allocation2 + $0x178] sm:$0xff]
    %v88 = vld [vmem:[#allocation2 + $0x180] sm:$0xff]
    %v89 = vld [vmem:[#allocation2 + $0x188] sm:$0xff]
    %v90 = vld [vmem:[#allocation2 + $0x190] sm:$0xff]
    %v91 = vld [vmem:[#allocation2 + $0x198] sm:$0xff]
    %v92 = vld [vmem:[#allocation2 + $0x1a0] sm:$0xff]
    %v93 = vld [vmem:[#allocation2 + $0x1a8] sm:$0xff]
    %v94 = vld [vmem:[#allocation2 + $0x1b0] sm:$0xff]
    %v95 = vld [vmem:[#allocation2 + $0x1b8] sm:$0xff]
    %v96 = vld [vmem:[#allocation2 + $0x1c0] sm:$0xff]
    %v97 = vld [vmem:[#allocation2 + $0x1c8] sm:$0xff]
    %v98 = vld [vmem:[#allocation2 + $0x1d0] sm:$0xff]
    %v99 = vld [vmem:[#allocation2 + $0x1d8] sm:$0xff]
    %v100 = vld [vmem:[#allocation2 + $0x1e0] sm:$0xff]
    %v101 = vld [vmem:[#allocation2 + $0x1e8] sm:$0xff]
    %v102 = vld [vmem:[#allocation2 + $0x1f0] sm:$0xff]
    %v103 = vld [vmem:[#allocation2 + $0x1f8] sm:$0xff]
    %v104 = vld [vmem:[#allocation2 + $0x200] sm:$0xff]
    %v105 = vld [vmem:[#allocation2 + $0x208] sm:$0xff]
    %v106 = vld [vmem:[#allocation2 + $0x210] sm:$0xff]
    %v107 = vld [vmem:[#allocation2 + $0x218] sm:$0xff]
    %v108 = vld [vmem:[#allocation2 + $0x220] sm:$0xff]
    %v109 = vld [vmem:[#allocation2 + $0x228] sm:$0xff]
    %v110 = vld [vmem:[#allocation2 + $0x230] sm:$0xff]
    %v111 = vld [vmem:[#allocation2 + $0x238] sm:$0xff]
    %v112 = vld [vmem:[#allocation2 + $0x240] sm:$0xff]
    %v113 = vld [vmem:[#allocation2 + $0x248] sm:$0xff]
    %v114 = vld [vmem:[#allocation2 + $0x250] sm:$0xff]
    %v115 = vld [vmem:[#allocation5] sm:$0xff]
    %v116 = vld [vmem:[#allocation5 + $0x8] sm:$0xff]
    %v117 = vld [vmem:[#allocation5 + $0x10] sm:$0xff]
    %v118 = vld [vmem:[#allocation5 + $0x18] sm:$0xff]
    %v119 = vld [vmem:[#allocation5 + $0x20] sm:$0xff]
    %v120 = vld [vmem:[#allocation5 + $0x28] sm:$0xff]
    %v121 = vld [vmem:[#allocation5 + $0x30] sm:$0xff]
    %v122 = vld [vmem:[#allocation5 + $0x38] sm:$0xff]
    %v123 = vld [vmem:[#allocation5 + $0x40] sm:$0xff]
    %v124 = vld [vmem:[#allocation5 + $0x48] sm:$0xff]
    %v125 = vld [vmem:[#allocation5 + $0x50] sm:$0xff]
    %v126 = vld [vmem:[#allocation5 + $0x58] sm:$0xff]
    %v127 = vld [vmem:[#allocation5 + $0x60] sm:$0xff]
    %v128 = vld [vmem:[#allocation5 + $0x68] sm:$0xff]
    %v129 = vld [vmem:[#allocation5 + $0x70] sm:$0xff]
    %v130 = vld [vmem:[#allocation5 + $0x78] sm:$0xff]
    %v131 = vld [vmem:[#allocation5 + $0x80] sm:$0xff]
    %v132 = vld [vmem:[#allocation5 + $0x88] sm:$0xff]
    %v133 = vld [vmem:[#allocation5 + $0x90] sm:$0xff]
    %v134 = vld [vmem:[#allocation5 + $0x98] sm:$0xff]
    %v135 = vld [vmem:[#allocation5 + $0xa0] sm:$0xff]
    %v136 = vld [vmem:[#allocation5 + $0xa8] sm:$0xff]
    %v137 = vld [vmem:[#allocation5 + $0xb0] sm:$0xff]
    %v138 = vld [vmem:[#allocation5 + $0xb8] sm:$0xff]
    %v139 = vld [vmem:[#allocation5 + $0xc0] sm:$0xff]
    %v140 = vld [vmem:[#allocation5 + $0xc8] sm:$0xff]
    %v141 = vld [vmem:[#allocation5 + $0xd0] sm:$0xff]
    %v142 = vld [vmem:[#allocation5 + $0xd8] sm:$0xff]
    %v143 = vld [vmem:[#allocation5 + $0xe0] sm:$0xff]
    %v144 = vld [vmem:[#allocation5 + $0xe8] sm:$0xff]
    %v145 = vld [vmem:[#allocation5 + $0xf0] sm:$0xff]
    %v146 = vld [vmem:[#allocation5 + $0xf8] sm:$0xff]
    %v147 = vld [vmem:[#allocation5 + $0x100] sm:$0xff]
    %v148 = vld [vmem:[#allocation5 + $0x108] sm:$0xff]
    %v149 = vld [vmem:[#allocation5 + $0x110] sm:$0xff]
    %v150 = vld [vmem:[#allocation5 + $0x118] sm:$0xff]
    %v151 = vld [vmem:[#allocation5 + $0x120] sm:$0xff]
    %v152 = vld [vmem:[#allocation5 + $0x128] sm:$0xff]
    %v153 = vld [vmem:[#allocation5 + $0x130] sm:$0xff]
    %v154 = vld [vmem:[#allocation5 + $0x138] sm:$0xff]
    %v155 = vld [vmem:[#allocation5 + $0x140] sm:$0xff]
    %v156 = vld [vmem:[#allocation5 + $0x148] sm:$0xff]
    %v157 = vld [vmem:[#allocation5 + $0x150] sm:$0xff]
    %v158 = vld [vmem:[#allocation5 + $0x158] sm:$0xff]
    %v159 = vld [vmem:[#allocation5 + $0x160] sm:$0xff]
    %v160 = vld [vmem:[#allocation5 + $0x168] sm:$0xff]
    %v161 = vld [vmem:[#allocation5 + $0x170] sm:$0xff]
    %v162 = vld [vmem:[#allocation5 + $0x178] sm:$0xff]
    %v163 = vld [vmem:[#allocation5 + $0x180] sm:$0xff]
    %v164 = vld [vmem:[#allocation5 + $0x188] sm:$0xff]
    %v165 = vld [vmem:[#allocation5 + $0x190] sm:$0xff]
    %v166 = vld [vmem:[#allocation5 + $0x198] sm:$0xff]
    %v167 = vld [vmem:[#allocation5 + $0x1a0] sm:$0xff]
    %v168 = vld [vmem:[#allocation5 + $0x1a8] sm:$0xff]
    %v169 = vld [vmem:[#allocation5 + $0x1b0] sm:$0xff]
    %v170 = vld [vmem:[#allocation5 + $0x1b8] sm:$0xff]
    %v171 = vld [vmem:[#allocation5 + $0x1c0] sm:$0xff]
    %v172 = vld [vmem:[#allocation5 + $0x1c8] sm:$0xff]
    %v173 = vld [vmem:[#allocation5 + $0x1d0] sm:$0xff]
    %v174 = vld [vmem:[#allocation5 + $0x1d8] sm:$0xff]
    %v175 = vld [vmem:[#allocation5 + $0x1e0] sm:$0xff]
    %v176 = vld [vmem:[#allocation5 + $0x1e8] sm:$0xff]
    %v177 = vld [vmem:[#allocation5 + $0x1f0] sm:$0xff]
    %v178 = vld [vmem:[#allocation5 + $0x1f8] sm:$0xff]
    %v179 = vld [vmem:[#allocation5 + $0x200] sm:$0xff]
    %v180 = vld [vmem:[#allocation5 + $0x208] sm:$0xff]
    %v181 = vld [vmem:[#allocation5 + $0x210] sm:$0xff]
    %v182 = vld [vmem:[#allocation5 + $0x218] sm:$0xff]
    %v183 = vld [vmem:[#allocation5 + $0x220] sm:$0xff]
    %v184 = vld [vmem:[#allocation5 + $0x228] sm:$0xff]
    %v185 = vld [vmem:[#allocation5 + $0x230] sm:$0xff]
    %v186 = vld [vmem:[#allocation5 + $0x238] sm:$0xff]
    %v187 = vld [vmem:[#allocation5 + $0x240] sm:$0xff]
    %v188 = vld [vmem:[#allocation5 + $0x248] sm:$0xff]
    %v189 = vld [vmem:[#allocation5 + $0x250] sm:$0xff]
    %v190 = vsub.f32 %v40, %v115
    %v191 = vsub.f32 %v41, %v116
    %v192 = vsub.f32 %v42, %v117
    %v193 = vsub.f32 %v43, %v118
    %v194 = vsub.f32 %v44, %v119
    %v195 = vsub.f32 %v45, %v120
    %v196 = vsub.f32 %v46, %v121
    %v197 = vsub.f32 %v47, %v122
    %v198 = vsub.f32 %v48, %v123
    %v199 = vsub.f32 %v49, %v124
    %v200 = vsub.f32 %v50, %v125
    %v201 = vsub.f32 %v51, %v126
    %v202 = vsub.f32 %v52, %v127
    %v203 = vsub.f32 %v53, %v128
    %v204 = vsub.f32 %v54, %v129
    %v205 = vsub.f32 %v55, %v130
    %v206 = vsub.f32 %v56, %v131
    %v207 = vsub.f32 %v57, %v132
    %v208 = vsub.f32 %v58, %v133
    %v209 = vsub.f32 %v59, %v134
    %v210 = vsub.f32 %v60, %v135
    %v211 = vsub.f32 %v61, %v136
    %v212 = vsub.f32 %v62, %v137
    %v213 = vsub.f32 %v63, %v138
    %v214 = vsub.f32 %v64, %v139
    %v215 = vsub.f32 %v65, %v140
    %v216 = vsub.f32 %v66, %v141
    %v217 = vsub.f32 %v67, %v142
    %v218 = vsub.f32 %v68, %v143
    %v219 = vsub.f32 %v69, %v144
    %v220 = vsub.f32 %v70, %v145
    %v221 = vsub.f32 %v71, %v146
    %v222 = vsub.f32 %v72, %v147
    %v223 = vsub.f32 %v73, %v148
    %v224 = vsub.f32 %v74, %v149
    %v225 = vsub.f32 %v75, %v150
    %v226 = vsub.f32 %v76, %v151
    %v227 = vsub.f32 %v77, %v152
    %v228 = vsub.f32 %v78, %v153
    %v229 = vsub.f32 %v79, %v154
    %v230 = vsub.f32 %v80, %v155
    %v231 = vsub.f32 %v81, %v156
    %v232 = vsub.f32 %v82, %v157
    %v233 = vsub.f32 %v83, %v158
    %v234 = vsub.f32 %v84, %v159
    %v235 = vsub.f32 %v85, %v160
    %v236 = vsub.f32 %v86, %v161
    %v237 = vsub.f32 %v87, %v162
    %v238 = vsub.f32 %v88, %v163
    %v239 = vsub.f32 %v89, %v164
    %v240 = vsub.f32 %v90, %v165
    %v241 = vsub.f32 %v91, %v166
    %v242 = vsub.f32 %v92, %v167
    %v243 = vsub.f32 %v93, %v168
    %v244 = vsub.f32 %v94, %v169
    %v245 = vsub.f32 %v95, %v170
    %v246 = vsub.f32 %v96, %v171
    %v247 = vsub.f32 %v97, %v172
    %v248 = vsub.f32 %v98, %v173
    %v249 = vsub.f32 %v99, %v174
    %v250 = vsub.f32 %v100, %v175
    %v251 = vsub.f32 %v101, %v176
    %v252 = vsub.f32 %v102, %v177
    %v253 = vsub.f32 %v103, %v178
    %v254 = vsub.f32 %v104, %v179
    %v255 = vsub.f32 %v105, %v180
    %v256 = vsub.f32 %v106, %v181
    %v257 = vsub.f32 %v107, %v182
    %v258 = vsub.f32 %v108, %v183
    %v259 = vsub.f32 %v109, %v184
    %v260 = vsub.f32 %v110, %v185
    %v261 = vsub.f32 %v111, %v186
    %v262 = vsub.f32 %v112, %v187
    %v263 = vsub.f32 %v113, %v188
    %v264 = vsub.f32 %v114, %v189
    %v265 = vmul.f32 %v190, %v190
    %v266 = vmul.f32 %v191, %v191
    %v267 = vmul.f32 %v192, %v192
    %v268 = vmul.f32 %v193, %v193
    %v269 = vmul.f32 %v194, %v194
    %v270 = vmul.f32 %v195, %v195
    %v271 = vmul.f32 %v196, %v196
    %v272 = vmul.f32 %v197, %v197
    %v273 = vmul.f32 %v198, %v198
    %v274 = vmul.f32 %v199, %v199
    %v275 = vmul.f32 %v200, %v200
    %v276 = vmul.f32 %v201, %v201
    %v277 = vmul.f32 %v202, %v202
    %v278 = vmul.f32 %v203, %v203
    %v279 = vmul.f32 %v204, %v204
    %v280 = vmul.f32 %v205, %v205
    %v281 = vmul.f32 %v206, %v206
    %v282 = vmul.f32 %v207, %v207
    %v283 = vmul.f32 %v208, %v208
    %v284 = vmul.f32 %v209, %v209
    %v285 = vmul.f32 %v210, %v210
    %v286 = vmul.f32 %v211, %v211
    %v287 = vmul.f32 %v212, %v212
    %v288 = vmul.f32 %v213, %v213
    %v289 = vmul.f32 %v214, %v214
    %v290 = vmul.f32 %v215, %v215
    %v291 = vmul.f32 %v216, %v216
    %v292 = vmul.f32 %v217, %v217
    %v293 = vmul.f32 %v218, %v218
    %v294 = vmul.f32 %v219, %v219
    %v295 = vmul.f32 %v220, %v220
    %v296 = vmul.f32 %v221, %v221
    %v297 = vmul.f32 %v222, %v222
    %v298 = vmul.f32 %v223, %v223
    %v299 = vmul.f32 %v224, %v224
    %v300 = vmul.f32 %v225, %v225
    %v301 = vmul.f32 %v226, %v226
    %v302 = vmul.f32 %v227, %v227
    %v303 = vmul.f32 %v228, %v228
    %v304 = vmul.f32 %v229, %v229
    %v305 = vmul.f32 %v230, %v230
    %v306 = vmul.f32 %v231, %v231
    %v307 = vmul.f32 %v232, %v232
    %v308 = vmul.f32 %v233, %v233
    %v309 = vmul.f32 %v234, %v234
    %v310 = vmul.f32 %v235, %v235
    %v311 = vmul.f32 %v236, %v236
    %v312 = vmul.f32 %v237, %v237
    %v313 = vmul.f32 %v238, %v238
    %v314 = vmul.f32 %v239, %v239
    %v315 = vmul.f32 %v240, %v240
    %v316 = vmul.f32 %v241, %v241
    %v317 = vmul.f32 %v242, %v242
    %v318 = vmul.f32 %v243, %v243
    %v319 = vmul.f32 %v244, %v244
    %v320 = vmul.f32 %v245, %v245
    %v321 = vmul.f32 %v246, %v246
    %v322 = vmul.f32 %v247, %v247
    %v323 = vmul.f32 %v248, %v248
    %v324 = vmul.f32 %v249, %v249
    %v325 = vmul.f32 %v250, %v250
    %v326 = vmul.f32 %v251, %v251
    %v327 = vmul.f32 %v252, %v252
    %v328 = vmul.f32 %v253, %v253
    %v329 = vmul.f32 %v254, %v254
    %v330 = vmul.f32 %v255, %v255
    %v331 = vmul.f32 %v256, %v256
    %v332 = vmul.f32 %v257, %v257
    %v333 = vmul.f32 %v258, %v258
    %v334 = vmul.f32 %v259, %v259
    %v335 = vmul.f32 %v260, %v260
    %v336 = vmul.f32 %v261, %v261
    %v337 = vmul.f32 %v262, %v262
    %v338 = vmul.f32 %v263, %v263
    %v339 = vmul.f32 %v264, %v264
    %v340 = vlaneseq
    %v341 = vshrl.u32 %v340, 7
    %v342 = vadd.s32 %v341, 8
    %v343 = vadd.s32 %v341, 16
    %v344 = vadd.s32 %v341, 24
    %v345 = vadd.s32 %v341, 32
    %v346 = vadd.s32 %v341, 40
    %v347 = vadd.s32 %v341, 48
    %v348 = vadd.s32 %v341, 56
    %v349 = vadd.s32 %v341, 64
    %v350 = vadd.s32 %v341, 72
    %v351 = vadd.s32 %v341, 80
    %v352 = vadd.s32 %v341, 88
    %v353 = vadd.s32 %v341, 96
    %v354 = vadd.s32 %v341, 104
    %v355 = vadd.s32 %v341, 112
    %v356 = vadd.s32 %v341, 120
    %v357 = vadd.s32 %v341, 128
    %v358 = vadd.s32 %v341, 136
    %v359 = vadd.s32 %v341, 144
    %v360 = vadd.s32 %v341, 152
    %v361 = vadd.s32 %v341, 160
    %v362 = vadd.s32 %v341, 168
    %v363 = vadd.s32 %v341, 176
    %v364 = vadd.s32 %v341, 184
    %v365 = vadd.s32 %v341, 192
    %s366 = smul.u32 0, 200
    %v367 = vstv %s366
    %v368 = vadd.s32 %v341, %v367
    %v369 = vadd.s32 %v342, %v367
    %v370 = vadd.s32 %v343, %v367
    %v371 = vadd.s32 %v344, %v367
    %v372 = vadd.s32 %v345, %v367
    %v373 = vadd.s32 %v346, %v367
    %v374 = vadd.s32 %v347, %v367
    %v375 = vadd.s32 %v348, %v367
    %v376 = vadd.s32 %v349, %v367
    %v377 = vadd.s32 %v350, %v367
    %v378 = vadd.s32 %v351, %v367
    %v379 = vadd.s32 %v352, %v367
    %v380 = vadd.s32 %v353, %v367
    %v381 = vadd.s32 %v354, %v367
    %v382 = vadd.s32 %v355, %v367
    %v383 = vadd.s32 %v356, %v367
    %v384 = vadd.s32 %v357, %v367
    %v385 = vadd.s32 %v358, %v367
    %v386 = vadd.s32 %v359, %v367
    %v387 = vadd.s32 %v360, %v367
    %v388 = vadd.s32 %v361, %v367
    %v389 = vadd.s32 %v362, %v367
    %v390 = vadd.s32 %v363, %v367
    %v391 = vadd.s32 %v364, %v367
    %v392 = vadd.s32 %v365, %v367
    %v393 = vlaneseq
    %v394 = vand.u32 %v393, 127
    %v395 = vadd.s32 %v394, 128
    %v396 = vadd.s32 %v394, 256
    %s397 = smul.u32 0, 384
    %v398 = vstv %s397
    %v399 = vadd.s32 %v394, %v398
    %v400 = vadd.s32 %v395, %v398
    %v401 = vadd.s32 %v396, %v398
    %vm402 = vcmp.lt.s32.totalorder %v368, 200
    %vm403 = vcmp.lt.s32.totalorder %v369, 200
    %vm404 = vcmp.lt.s32.totalorder %v370, 200
    %vm405 = vcmp.lt.s32.totalorder %v371, 200
    %vm406 = vcmp.lt.s32.totalorder %v372, 200
    %vm407 = vcmp.lt.s32.totalorder %v373, 200
    %vm408 = vcmp.lt.s32.totalorder %v374, 200
    %vm409 = vcmp.lt.s32.totalorder %v375, 200
    %vm410 = vcmp.lt.s32.totalorder %v376, 200
    %vm411 = vcmp.lt.s32.totalorder %v377, 200
    %vm412 = vcmp.lt.s32.totalorder %v378, 200
    %vm413 = vcmp.lt.s32.totalorder %v379, 200
    %vm414 = vcmp.lt.s32.totalorder %v380, 200
    %vm415 = vcmp.lt.s32.totalorder %v381, 200
    %vm416 = vcmp.lt.s32.totalorder %v382, 200
    %vm417 = vcmp.lt.s32.totalorder %v383, 200
    %vm418 = vcmp.lt.s32.totalorder %v384, 200
    %vm419 = vcmp.lt.s32.totalorder %v385, 200
    %vm420 = vcmp.lt.s32.totalorder %v386, 200
    %vm421 = vcmp.lt.s32.totalorder %v387, 200
    %vm422 = vcmp.lt.s32.totalorder %v388, 200
    %vm423 = vcmp.lt.s32.totalorder %v389, 200
    %vm424 = vcmp.lt.s32.totalorder %v390, 200
    %vm425 = vcmp.lt.s32.totalorder %v391, 200
    %vm426 = vcmp.lt.s32.totalorder %v392, 200
    %vm427 = vcmp.lt.s32.totalorder %v399, 300
    %vm428 = vcmp.lt.s32.totalorder %v400, 300
    %vm429 = vcmp.lt.s32.totalorder %v401, 300
    %vm430 = vmand %vm402, %vm427
    %vm431 = vmand %vm402, %vm428
    %vm432 = vmand %vm402, %vm429
    %vm433 = vmand %vm403, %vm427
    %vm434 = vmand %vm403, %vm428
    %vm435 = vmand %vm403, %vm429
    %vm436 = vmand %vm404, %vm427
    %vm437 = vmand %vm404, %vm428
    %vm438 = vmand %vm404, %vm429
    %vm439 = vmand %vm405, %vm427
    %vm440 = vmand %vm405, %vm428
    %vm441 = vmand %vm405, %vm429
    %vm442 = vmand %vm406, %vm427
    %vm443 = vmand %vm406, %vm428
    %vm444 = vmand %vm406, %vm429
    %vm445 = vmand %vm407, %vm427
    %vm446 = vmand %vm407, %vm428
    %vm447 = vmand %vm407, %vm429
    %vm448 = vmand %vm408, %vm427
    %vm449 = vmand %vm408, %vm428
    %vm450 = vmand %vm408, %vm429
    %vm451 = vmand %vm409, %vm427
    %vm452 = vmand %vm409, %vm428
    %vm453 = vmand %vm409, %vm429
    %vm454 = vmand %vm410, %vm427
    %vm455 = vmand %vm410, %vm428
    %vm456 = vmand %vm410, %vm429
    %vm457 = vmand %vm411, %vm427
    %vm458 = vmand %vm411, %vm428
    %vm459 = vmand %vm411, %vm429
    %vm460 = vmand %vm412, %vm427
    %vm461 = vmand %vm412, %vm428
    %vm462 = vmand %vm412, %vm429
    %vm463 = vmand %vm413, %vm427
    %vm464 = vmand %vm413, %vm428
    %vm465 = vmand %vm413, %vm429
    %vm466 = vmand %vm414, %vm427
    %vm467 = vmand %vm414, %vm428
    %vm468 = vmand %vm414, %vm429
    %vm469 = vmand %vm415, %vm427
    %vm470 = vmand %vm415, %vm428
    %vm471 = vmand %vm415, %vm429
    %vm472 = vmand %vm416, %vm427
    %vm473 = vmand %vm416, %vm428
    %vm474 = vmand %vm416, %vm429
    %vm475 = vmand %vm417, %vm427
    %vm476 = vmand %vm417, %vm428
    %vm477 = vmand %vm417, %vm429
    %vm478 = vmand %vm418, %vm427
    %vm479 = vmand %vm418, %vm428
    %vm480 = vmand %vm418, %vm429
    %vm481 = vmand %vm419, %vm427
    %vm482 = vmand %vm419, %vm428
    %vm483 = vmand %vm419, %vm429
    %vm484 = vmand %vm420, %vm427
    %vm485 = vmand %vm420, %vm428
    %vm486 = vmand %vm420, %vm429
    %vm487 = vmand %vm421, %vm427
    %vm488 = vmand %vm421, %vm428
    %vm489 = vmand %vm421, %vm429
    %vm490 = vmand %vm422, %vm427
    %vm491 = vmand %vm422, %vm428
    %vm492 = vmand %vm422, %vm429
    %vm493 = vmand %vm423, %vm427
    %vm494 = vmand %vm423, %vm428
    %vm495 = vmand %vm423, %vm429
    %vm496 = vmand %vm424, %vm427
    %vm497 = vmand %vm424, %vm428
    %vm498 = vmand %vm424, %vm429
    %vm499 = vmand %vm425, %vm427
    %vm500 = vmand %vm425, %vm428
    %vm501 = vmand %vm425, %vm429
    %vm502 = vmand %vm426, %vm427
    %vm503 = vmand %vm426, %vm428
    %vm504 = vmand %vm426, %vm429
    %v505 = vsel %vm430, %v265, 0.0
    %v506 = vsel %vm431, %v266, 0.0
    %v507 = vsel %vm432, %v267, 0.0
    %v508 = vsel %vm433, %v268, 0.0
    %v509 = vsel %vm434, %v269, 0.0
    %v510 = vsel %vm435, %v270, 0.0
    %v511 = vsel %vm436, %v271, 0.0
    %v512 = vsel %vm437, %v272, 0.0
    %v513 = vsel %vm438, %v273, 0.0
    %v514 = vsel %vm439, %v274, 0.0
    %v515 = vsel %vm440, %v275, 0.0
    %v516 = vsel %vm441, %v276, 0.0
    %v517 = vsel %vm442, %v277, 0.0
    %v518 = vsel %vm443, %v278, 0.0
    %v519 = vsel %vm444, %v279, 0.0
    %v520 = vsel %vm445, %v280, 0.0
    %v521 = vsel %vm446, %v281, 0.0
    %v522 = vsel %vm447, %v282, 0.0
    %v523 = vsel %vm448, %v283, 0.0
    %v524 = vsel %vm449, %v284, 0.0
    %v525 = vsel %vm450, %v285, 0.0
    %v526 = vsel %vm451, %v286, 0.0
    %v527 = vsel %vm452, %v287, 0.0
    %v528 = vsel %vm453, %v288, 0.0
    %v529 = vsel %vm454, %v289, 0.0
    %v530 = vsel %vm455, %v290, 0.0
    %v531 = vsel %vm456, %v291, 0.0
    %v532 = vsel %vm457, %v292, 0.0
    %v533 = vsel %vm458, %v293, 0.0
    %v534 = vsel %vm459, %v294, 0.0
    %v535 = vsel %vm460, %v295, 0.0
    %v536 = vsel %vm461, %v296, 0.0
    %v537 = vsel %vm462, %v297, 0.0
    %v538 = vsel %vm463, %v298, 0.0
    %v539 = vsel %vm464, %v299, 0.0
    %v540 = vsel %vm465, %v300, 0.0
    %v541 = vsel %vm466, %v301, 0.0
    %v542 = vsel %vm467, %v302, 0.0
    %v543 = vsel %vm468, %v303, 0.0
    %v544 = vsel %vm469, %v304, 0.0
    %v545 = vsel %vm470, %v305, 0.0
    %v546 = vsel %vm471, %v306, 0.0
    %v547 = vsel %vm472, %v307, 0.0
    %v548 = vsel %vm473, %v308, 0.0
    %v549 = vsel %vm474, %v309, 0.0
    %v550 = vsel %vm475, %v310, 0.0
    %v551 = vsel %vm476, %v311, 0.0
    %v552 = vsel %vm477, %v312, 0.0
    %v553 = vsel %vm478, %v313, 0.0
    %v554 = vsel %vm479, %v314, 0.0
    %v555 = vsel %vm480, %v315, 0.0
    %v556 = vsel %vm481, %v316, 0.0
    %v557 = vsel %vm482, %v317, 0.0
    %v558 = vsel %vm483, %v318, 0.0
    %v559 = vsel %vm484, %v319, 0.0
    %v560 = vsel %vm485, %v320, 0.0
    %v561 = vsel %vm486, %v321, 0.0
    %v562 = vsel %vm487, %v322, 0.0
    %v563 = vsel %vm488, %v323, 0.0
    %v564 = vsel %vm489, %v324, 0.0
    %v565 = vsel %vm490, %v325, 0.0
    %v566 = vsel %vm491, %v326, 0.0
    %v567 = vsel %vm492, %v327, 0.0
    %v568 = vsel %vm493, %v328, 0.0
    %v569 = vsel %vm494, %v329, 0.0
    %v570 = vsel %vm495, %v330, 0.0
    %v571 = vsel %vm496, %v331, 0.0
    %v572 = vsel %vm497, %v332, 0.0
    %v573 = vsel %vm498, %v333, 0.0
    %v574 = vsel %vm499, %v334, 0.0
    %v575 = vsel %vm500, %v335, 0.0
    %v576 = vsel %vm501, %v336, 0.0
    %v577 = vsel %vm502, %v337, 0.0
    %v578 = vsel %vm503, %v338, 0.0
    %v579 = vsel %vm504, %v339, 0.0
    %v580 = vadd.f32 %v505, %v506
    %v581 = vadd.f32 %v508, %v509
    %v582 = vadd.f32 %v511, %v512
    %v583 = vadd.f32 %v514, %v515
    %v584 = vadd.f32 %v517, %v518
    %v585 = vadd.f32 %v520, %v521
    %v586 = vadd.f32 %v523, %v524
    %v587 = vadd.f32 %v526, %v527
    %v588 = vadd.f32 %v529, %v530
    %v589 = vadd.f32 %v532, %v533
    %v590 = vadd.f32 %v535, %v536
    %v591 = vadd.f32 %v538, %v539
    %v592 = vadd.f32 %v541, %v542
    %v593 = vadd.f32 %v544, %v545
    %v594 = vadd.f32 %v547, %v548
    %v595 = vadd.f32 %v550, %v551
    %v596 = vadd.f32 %v553, %v554
    %v597 = vadd.f32 %v556, %v557
    %v598 = vadd.f32 %v559, %v560
    %v599 = vadd.f32 %v562, %v563
    %v600 = vadd.f32 %v565, %v566
    %v601 = vadd.f32 %v568, %v569
    %v602 = vadd.f32 %v571, %v572
    %v603 = vadd.f32 %v574, %v575
    %v604 = vadd.f32 %v577, %v578
    %v605 = vadd.f32 %v580, %v507
    %v606 = vadd.f32 %v581, %v510
    %v607 = vadd.f32 %v582, %v513
    %v608 = vadd.f32 %v583, %v516
    %v609 = vadd.f32 %v584, %v519
    %v610 = vadd.f32 %v585, %v522
    %v611 = vadd.f32 %v586, %v525
    %v612 = vadd.f32 %v587, %v528
    %v613 = vadd.f32 %v588, %v531
    %v614 = vadd.f32 %v589, %v534
    %v615 = vadd.f32 %v590, %v537
    %v616 = vadd.f32 %v591, %v540
    %v617 = vadd.f32 %v592, %v543
    %v618 = vadd.f32 %v593, %v546
    %v619 = vadd.f32 %v594, %v549
    %v620 = vadd.f32 %v595, %v552
    %v621 = vadd.f32 %v596, %v555
    %v622 = vadd.f32 %v597, %v558
    %v623 = vadd.f32 %v598, %v561
    %v624 = vadd.f32 %v599, %v564
    %v625 = vadd.f32 %v600, %v567
    %v626 = vadd.f32 %v601, %v570
    %v627 = vadd.f32 %v602, %v573
    %v628 = vadd.f32 %v603, %v576
    %v629 = vadd.f32 %v604, %v579
    %v630 = vadd.f32 %v605, %v606
    %v631 = vadd.f32 %v630, %v607
    %v632 = vadd.f32 %v631, %v608
    %v633 = vadd.f32 %v632, %v609
    %v634 = vadd.f32 %v633, %v610
    %v635 = vadd.f32 %v634, %v611
    %v636 = vadd.f32 %v635, %v612
    %v637 = vadd.f32 %v636, %v613
    %v638 = vadd.f32 %v637, %v614
    %v639 = vadd.f32 %v638, %v615
    %v640 = vadd.f32 %v639, %v616
    %v641 = vadd.f32 %v640, %v617
    %v642 = vadd.f32 %v641, %v618
    %v643 = vadd.f32 %v642, %v619
    %v644 = vadd.f32 %v643, %v620
    %v645 = vadd.f32 %v644, %v621
    %v646 = vadd.f32 %v645, %v622
    %v647 = vadd.f32 %v646, %v623
    %v648 = vadd.f32 %v647, %v624
    %v649 = vadd.f32 %v648, %v625
    %v650 = vadd.f32 %v649, %v626
    %v651 = vadd.f32 %v650, %v627
    %v652 = vadd.f32 %v651, %v628
    %v653 = vadd.f32 %v652, %v629
    %654 = vst [vmem:[#allocation7] sm:$0xff] %v653
    // Predicated region
    $region18: #{tpu_custom_call.1} parent=1 // pred_check
      _
    $region19: #{tpu_custom_call.1} parent=1 // pred_check_branch
      %656 = sbr.rel (0) target = $region21
    $region20: #{tpu_custom_call.1} parent=1 // pred_region
      %s658 = ssub.s32 128, 128
      %659 = vsyncadd [#allocation4], %s658
      %s661 = sshll.u32 [#allocation7], 4
      %s662 = int_to_ptr.vmem [resolvable:$true] %s661
      %664 = dma.vmem_to_hbm [thread:$0]  %s662, 128, %s2, [#allocation4]
    $region21: #{tpu_custom_call.1} parent=1 // pred_fallthru
      _
    // Predicated region
    $region22: #{tpu_custom_call.1} parent=1 // pred_check
      _
    $region23: #{tpu_custom_call.1} parent=1 // pred_check_branch
      %666 = sbr.rel (0) target = $region25
    $region24: #{tpu_custom_call.1} parent=1 // pred_region
      %667 = dma.done [#allocation4], 128
    $region25: #{tpu_custom_call.1} parent=1 // pred_fallthru
      _
    %668 = vsyncpa [#allocation3], 1
    %669 = vsyncpa [#allocation6], 1
    %670 = vsyncpa [#allocation4], 1

</llo_original>
